<compile_context>
chip_gen: v7x
topology: tpu7x:2x2x1
jax: 0.10.0
libtpu: 0.0.40
codegen_flags: <defaults>
</compile_context>

<pallas_src>
import functools

import jax
import jax.numpy as jnp
from jax import lax
from jax.experimental import pallas as pl
from jax.experimental.pallas import tpu as pltpu


_OUT_BLOCK_BUDGET = 2 * 1024 * 1024   # f32 output/accumulator block, per buffer
_FUSE_ROWS = 256                      # target b_blk*C for the fused small-C path


def _cdiv(a: int, b: int) -> int:
    return -(-a // b)


def _vmem_budgets():
    """Generation-aware budgets: (x-tile budget bytes, vmem_limit_bytes)."""
    try:
        cap = pltpu.get_tpu_info().vmem_capacity_bytes
    except Exception:  # interpret mode / older jax: stay conservative (v7x-safe)
        cap = 64 * 1024 * 1024
    if cap >= 96 * 1024 * 1024:          # v5e / v6e: 128 MiB physical VMEM
        return 12 * 1024 * 1024, 64 * 1024 * 1024
    # v7x: 64 MiB physical -> leave headroom for the double-buffered output
    # block and Mosaic internal scratch.
    return 8 * 1024 * 1024, 44 * 1024 * 1024


def _scm_batched_kernel(x_ref, o_ref, *scratch, n_t, demean, n_kt, single_exact):
    """Large-C path.  x block: (b_blk, C, t_tile); o block: (b_blk, C, C) f32.

    The Gram is accumulated directly into o_ref (block index constant along
    the reduction axis => resident f32 output block)."""
    inv = (1.0 / (n_t - 1)) if n_t != 1 else float("inf")  # T==1 -> inf, like PyTorch
    dn_gram = (((2,), (2,)), ((0,), (0,)))      # contract t, batch over b
    dn_sum = (((2,), (1,)), ((0,), (0,)))       # x (b,C,t) . ones (b,t,1) -> (b,C,1)
    x = x_ref[...]

    def row_sums(v):
        ones = jnp.ones((v.shape[0], v.shape[2], 1), x_ref.dtype)
        return lax.dot_general(v, ones, dn_sum, preferred_element_type=jnp.float32)

    if n_kt == 1:
        # Single T tile: no zero-init, no read-modify-write, write o_ref once.
        if demean and single_exact:
            xf = x.astype(jnp.float32)
            xf = xf - jnp.mean(xf, axis=-1, keepdims=True)
            x = xf.astype(x_ref.dtype)  # bf16 in -> tiny re-quantization of centered vals
        g = lax.dot_general(x, x, dn_gram, preferred_element_type=jnp.float32)
        if demean and not single_exact:
            # zero-padded single tile: demean via sufficient statistics
            s = row_sums(x)
            g = g - lax.dot_general(s, s, dn_gram,
                                    preferred_element_type=jnp.float32) * (1.0 / n_t)
        o_ref[...] = (g * inv).astype(o_ref.dtype)
        return

    sum_ref = scratch[0] if demean else None
    k = pl.program_id(1)

    @pl.when(k == 0)
    def _init():
        o_ref[...] = jnp.zeros_like(o_ref)
        if sum_ref is not None:
            sum_ref[...] = jnp.zeros_like(sum_ref)

    o_ref[...] += lax.dot_general(x, x, dn_gram, preferred_element_type=jnp.float32)
    if sum_ref is not None:
        # Row sums on the MXU: no f32 tile copy, no cross-lane reduce per step.
        sum_ref[...] += row_sums(x)

    @pl.when(k == n_kt - 1)
    def _finalize():
        acc = o_ref[...]
        if sum_ref is not None:
            s = sum_ref[...]
            # sum_t (x-m)(x-m)^T = sum_t x x^T - s s^T / T   (uncentered Gram +
            # mean correction; f32 accumulation is normally sufficient)
            acc = acc - lax.dot_general(s, s, dn_gram,
                                        preferred_element_type=jnp.float32) * (1.0 / n_t)
        o_ref[...] = (acc * inv).astype(o_ref.dtype)


def _scm_fused_kernel(x_ref, o_ref, *scratch, n_t, demean, n_kt, single_exact,
                      b_blk, n_c):
    """Small-C path.  x block: (b_blk*C, t_tile) with the batch folded into
    rows; one lane/MXU-dense 2-D matmul yields a (b_blk*C, b_blk*C) Gram whose
    b_blk diagonal CxC blocks are the per-sample covariances."""
    inv = (1.0 / (n_t - 1)) if n_t != 1 else float("inf")
    dn_gram = (((1,), (1,)), ((), ()))          # contract t
    x = x_ref[...]

    def row_sums(v):
        ones = jnp.ones((v.shape[1], 1), x_ref.dtype)
        return lax.dot_general(v, ones, (((1,), (0,)), ((), ())),
                               preferred_element_type=jnp.float32)   # (R, 1)

    def write_out(g):
        for i in range(b_blk):  # static slices of the diagonal CxC blocks
            o_ref[i, :, :] = g[i * n_c:(i + 1) * n_c,
                               i * n_c:(i + 1) * n_c].astype(o_ref.dtype)

    if n_kt == 1:
        if demean and single_exact:
            xf = x.astype(jnp.float32)
            xf = xf - jnp.mean(xf, axis=-1, keepdims=True)
            x = xf.astype(x_ref.dtype)
        g = lax.dot_general(x, x, dn_gram, preferred_element_type=jnp.float32)
        if demean and not single_exact:
            s = row_sums(x)
            g = g - lax.dot_general(s, s, dn_gram,
                                    preferred_element_type=jnp.float32) * (1.0 / n_t)
        write_out(g * inv)
        return

    acc_ref = scratch[0]
    sum_ref = scratch[1] if demean else None
    k = pl.program_id(1)

    @pl.when(k == 0)
    def _init():
        acc_ref[...] = jnp.zeros_like(acc_ref)
        if sum_ref is not None:
            sum_ref[...] = jnp.zeros_like(sum_ref)

    acc_ref[...] += lax.dot_general(x, x, dn_gram, preferred_element_type=jnp.float32)
    if sum_ref is not None:
        sum_ref[...] += row_sums(x)

    @pl.when(k == n_kt - 1)
    def _finalize():
        g = acc_ref[...]
        if sum_ref is not None:
            s = sum_ref[...]
            g = g - lax.dot_general(s, s, dn_gram,
                                    preferred_element_type=jnp.float32) * (1.0 / n_t)
        write_out(g * inv)


def scm_pool(x: jax.Array, demean: bool = False, *, t_tile: int | None = None,
             b_block: int | None = None, fuse_batch: bool | None = None) -> jax.Array:
    """Batched sample covariance: x (B, C, T) -> (B, C, C), f32 output.

    Matches SCMPool.forward: optional per-channel demeaning along T, then
    x @ x^T / (T - 1).  (T == 1 yields inf, like the PyTorch module.)"""
    B, C, T = x.shape
    itemsize = jnp.dtype(x.dtype).itemsize
    x_tile_budget, vmem_limit = _vmem_budgets()

    # ---- time tiling (zero-pad ragged T; zeros are exact for Gram & sums) ----
    if t_tile is None:
        if C * T * itemsize <= x_tile_budget:
            t_tile = T
        else:
            t_max = max(128, (x_tile_budget // (C * itemsize)) // 128 * 128)
            nk = _cdiv(T, t_max)
            t_tile = _cdiv(_cdiv(T, nk), 128) * 128   # balanced tiles, pad < nk*128
    else:
        t_tile = min(int(t_tile), T)
        if t_tile < T and t_tile % 128 != 0:
            t_tile = max(128, (t_tile // 128) * 128)  # Mosaic lane alignment
    n_kt = _cdiv(T, t_tile)
    t_total = n_kt * t_tile
    padded = t_total != T
    single_exact = (n_kt == 1) and not padded

    # ---- batch blocking (>= 2 batch grid steps for v7x dual TensorCores) ----
    max_by_x = max(1, x_tile_budget // max(1, C * t_tile * itemsize))
    max_by_out = max(1, _OUT_BLOCK_BUDGET // max(1, C * C * 4))
    b_cap = max(1, min(B // 2 if B >= 2 else 1, max_by_x, max_by_out))

    if fuse_batch is None:
        fuse_batch = C < 128
    if b_block is not None:
        b_blk = int(b_block)
        assert B % b_blk == 0, (B, b_blk)
        if fuse_batch and not ((b_blk * C) % 8 == 0 or b_blk == B):
            fuse_batch = False   # fused path needs an 8-row-aligned block
    else:
        b_blk = None
        if fuse_batch:
            cap = min(b_cap, max(1, _FUSE_ROWS // C))
            for b in range(cap, 0, -1):
                if B % b == 0 and ((b * C) % 8 == 0 or b == B):
                    b_blk = b
                    break
            if b_blk is None:
                fuse_batch = False
        if b_blk is None:
            for b in range(min(b_cap, B), 0, -1):
                if B % b == 0:
                    b_blk = b
                    break
    n_kb = B // b_blk

    if padded:
        x = jnp.pad(x, ((0, 0), (0, 0), (0, t_total - T)))

    if fuse_batch:
        rows = b_blk * C
        operand = x.reshape(B * C, t_total)
        in_specs = [pl.BlockSpec((rows, t_tile), lambda b, k: (b, k))]
        scratch = []
        if n_kt > 1:
            scratch.append(pltpu.VMEM((rows, rows), jnp.float32))
            if demean:
                scratch.append(pltpu.VMEM((rows, 1), jnp.float32))
        kernel = functools.partial(
            _scm_fused_kernel, n_t=T, demean=demean, n_kt=n_kt,
            single_exact=single_exact, b_blk=b_blk, n_c=C)
    else:
        operand = x
        in_specs = [pl.BlockSpec((b_blk, C, t_tile), lambda b, k: (b, 0, k))]
        scratch = []
        if n_kt > 1 and demean:
            scratch.append(pltpu.VMEM((b_blk, C, 1), jnp.float32))
        kernel = functools.partial(
            _scm_batched_kernel, n_t=T, demean=demean, n_kt=n_kt,
            single_exact=single_exact)

    # TODO(synk): optional bf16 input contract at the caller (2x HBM traffic win);
    # kept in the input dtype here to preserve the module's numerics.
    return pl.pallas_call(
        kernel,
        out_shape=jax.ShapeDtypeStruct((B, C, C), jnp.float32),
        grid_spec=pltpu.PrefetchScalarGridSpec(
            num_scalar_prefetch=0,
            grid=(n_kb, n_kt),                           # reduction axis last
            in_specs=in_specs,
            out_specs=pl.BlockSpec((b_blk, C, C), lambda b, k: (b, 0, 0)),
            scratch_shapes=scratch,
        ),
        compiler_params=pltpu.CompilerParams(
            dimension_semantics=("parallel", "arbitrary"),
            vmem_limit_bytes=vmem_limit,
        ),
        cost_estimate=pl.CostEstimate(
            flops=2 * B * C * C * T,
            transcendentals=0,
            bytes_accessed=B * C * T * itemsize + B * C * C * 4,
        ),
    )(operand)


def _scm_pool_ref(x: jax.Array, demean: bool = False) -> jax.Array:
    x = x.astype(jnp.float32)
    n_t = x.shape[-1]
    if demean:
        x = x - jnp.mean(x, axis=-1, keepdims=True)
    return jnp.einsum("bct,bdt->bcd", x, x) / (n_t - 1)


def _check(out, ref, tag, atol=1e-3, rtol=1e-3):
    assert out.shape == ref.shape, (tag, out.shape, ref.shape)
    err = jnp.max(jnp.abs(out - ref))
    assert jnp.allclose(out, ref, atol=atol, rtol=rtol), f"{tag}: max err {err}"


if __name__ == "__main__":
    # 1) Module-sized test (B=2, C=4, T=16): batched path, single T tile.
    B, C, T = 2, 4, 16
    x = jax.random.normal(jax.random.PRNGKey(0), (B, C, T), dtype=jnp.float32)
    for demean in (False, True):
        out = scm_pool(x, demean=demean)
        jax.block_until_ready(out)
        _check(out, _scm_pool_ref(x, demean=demean), f"small demean={demean}",
               atol=1e-5, rtol=1e-5)

    # 2) Fused small-C path with a tiled T reduction (batch folded into one
    #    MXU matmul, accumulator init/finalize, MXU row-sum demean).
    x2 = jax.random.normal(jax.random.PRNGKey(0), (4, 8, 256), dtype=jnp.float32)
    for demean in (False, True):
        out2 = scm_pool(x2, demean=demean, t_tile=128)
        jax.block_until_ready(out2)
        _check(out2, _scm_pool_ref(x2, demean=demean), f"fused demean={demean}")

    # 3) Batched path, tiled T reduction, accumulating directly into the
    #    resident f32 output block.
    x3 = jax.random.normal(jax.random.PRNGKey(0), (2, 8, 256), dtype=jnp.float32)
    for demean in (False, True):
        out3 = scm_pool(x3, demean=demean, t_tile=128, fuse_batch=False)
        jax.block_until_ready(out3)
        _check(out3, _scm_pool_ref(x3, demean=demean), f"batched demean={demean}")

    # 4) Ragged T: zero-padded to a tile multiple (mathematically exact).
    x4 = jax.random.normal(jax.random.PRNGKey(0), (2, 8, 200), dtype=jnp.float32)
    for demean in (False, True):
        out4 = scm_pool(x4, demean=demean, t_tile=128)
        jax.block_until_ready(out4)
        _check(out4, _scm_pool_ref(x4, demean=demean), f"padded demean={demean}")

    print("KERNEL_OK")
</pallas_src>

<mosaic_0001>
module attributes {stable_mosaic.version = 11 : i64} {
  func.func @_scm_batched_kernel(%arg0: i32, %arg1: i32, %arg2: memref<1x4x16xf32, #tpu.memory_space<vmem>>, %arg3: memref<1x4x4xf32, #tpu.memory_space<vmem>>) attributes {dimension_semantics = [#tpu.dimension_semantics<parallel>, #tpu.dimension_semantics<arbitrary>], iteration_bounds = array<i64: 2, 1>, scalar_prefetch = 0 : i64, scratch_operands = 0 : i64, tpu.core_type = #tpu.core_type<tc>, window_params = [{transform_indices = @transform_0, window_bounds = array<i64: 1, 4, 16>}, {transform_indices = @transform_1, window_bounds = array<i64: 1, 4, 4>}]} {
    %c0 = arith.constant 0 : index
    %c0_0 = arith.constant 0 : index
    %c0_1 = arith.constant 0 : index
    %0 = vector.load %arg2[%c0, %c0_0, %c0_1] : memref<1x4x16xf32, #tpu.memory_space<vmem>>, vector<1x4x16xf32>
    %cst = arith.constant dense<0.000000e+00> : vector<1x4x4xf32>
    %1 = tpu.matmul %0, %0, %cst {dimension_numbers = #tpu.dot_dimension_numbers<[2], [2], [1], [1], [0, 0, 0, 1, 1, 1], [0], [0]>} : vector<1x4x16xf32>, vector<1x4x16xf32>, vector<1x4x4xf32> -> vector<1x4x4xf32>
    %cst_2 = arith.constant 0.0666666701 : f32
    %2 = vector.broadcast %cst_2 : f32 to vector<1x4x4xf32>
    %3 = arith.mulf %1, %2 : vector<1x4x4xf32>
    %c0_3 = arith.constant 0 : index
    %c0_4 = arith.constant 0 : index
    %c0_5 = arith.constant 0 : index
    %4 = vector.load %arg3[%c0_3, %c0_4, %c0_5] : memref<1x4x4xf32, #tpu.memory_space<vmem>>, vector<1x4x4xf32>
    tpu.vector_store %arg3[%c0_3, %c0_4, %c0_5], %3 {strides = array<i32>} : memref<1x4x4xf32, #tpu.memory_space<vmem>>, vector<1x4x4xf32>,
    return
  }
  func.func @transform_0(%arg0: i32, %arg1: i32) -> (i32, i32, i32) {
    %c0_i32 = arith.constant 0 : i32
    %c0_i32_0 = arith.constant 0 : i32
    return %arg0, %c0_i32, %arg1 : i32, i32, i32
  }
  func.func @transform_1(%arg0: i32, %arg1: i32) -> (i32, i32, i32) {
    %c0_i32 = arith.constant 0 : i32
    %c0_i32_0 = arith.constant 0 : i32
    %c0_i32_1 = arith.constant 0 : i32
    return %arg0, %c0_i32, %c0_i32_0 : i32, i32, i32
  }
}

</mosaic_0001>

<llo_original>
// kernel: tpu_custom_call.1
$region0: #{tpu_custom_call.1}
  #allocation0 [shape = 'u32[]', space=smem, size = 0x4, offset = 0x4, fixed_abs, tag = 'smem constant byte address 0x4 - core index']
  #allocation1 [shape = 'u32[144,128]{1,0:T(1,128)}', space=vmem, size = 0x12000, scoped, tag = 'internal scratch']
  %s0 = inlined_call_operand.hbm [shape: f32[2,4,16], index: 0, kind: input, shape index: {}]
  %s1 = inlined_call_operand.hbm [shape: f32[2,4,4], index: 1, kind: output, shape index: {}]
  %s2 = sld [smem:[#allocation0]]
  $region41: #{tpu_custom_call.1} parent=0
    _
  %s4 = ssub.s32 1, %s2
  %s5 = scalar_select 0, %s4, %s2
  $region1: #{tpu_custom_call.1} parent=0
    #allocation2 [shape = 'u8[4096]{0}', space=vmem, size = 0x1000, scoped, tag = 'input window, operand 0']
    #allocation3 [shape = 's32[2]{0}', space=sflag, size = 0x8, scoped, tag = 'scoped memory for tpu_custom_call.1']
    #allocation4 [shape = 's32[2]{0}', space=sflag, size = 0x8, scoped, tag = 'scoped memory for tpu_custom_call.1']
    #allocation5 [shape = 'u8[4096]{0}', space=vmem, size = 0x1000, scoped, tag = 'output window, operand 0']
    %6 = vsyncpa [#allocation3], 0
    %s7 = scalar_lea.sflag [#allocation3], 1
    %8 = vsyncpa %s7, 0
    %9 = vsyncpa [#allocation4], 0
    %s10 = scalar_lea.sflag [#allocation4], 1
    %11 = vsyncpa %s10, 0
    loop: start=0, step=1, limit=4
    $region2: #{tpu_custom_call.1} parent=1 // loop_pre_header
      _
    $region3: #{tpu_custom_call.1} parent=1 // loop_header
      %s13 = sphi 0, %s17
      %p14 = scmp.ge.s32.totalorder %s13, 4
      %s20 = sphi 0, %s32
      %s21 = sphi 0, %s28
      %s22 = sphi 0, %s20
      %s23 = sphi 0, %s21
      %s24 = sphi 0, %s22
      %s25 = sphi 0, %s23
      %s37 = sphi 0, %s39
      %s40 = sphi 0, %s37
      %s41 = sphi 0, %s40
      %s57 = sphi 0, %s41
      %s63 = sphi 0, %s65
      %s66 = sphi 0, %s63
      %s67 = sphi 0, %s66
      %s83 = sphi 0, %s67
    $region4: #{tpu_custom_call.1} parent=1 // loop_header_branch
      %16 = sbr.rel (%p14) target = $region8
    $region5: #{tpu_custom_call.1} parent=1 // loop_body
      %s18 = ssub.s32 %s13, 1
      %s19 = ssub.s32 %s13, 2
      %s26 = sadd.s32 1, %s21
      %p27 = scmp.ge.s32.totalorder %s26, 1
      %s28 = scalar_select %p27, 0, %s26
      %s29 = sadd.s32 1, %s20
      %s30 = scalar_select %p27, %s29, %s20
      %p31 = scmp.ge.s32.totalorder %s30, 2
      %s32 = scalar_select %p31, 0, %s30
      %s33 = ssub.s32 %s20, %s32
      %s34 = ssub.s32 %s21, %s28
      %s35 = sor.u32 %s33, %s34
      %p36 = scmp.eq.s32.totalorder %s35, 0
      %s38 = sadd.s32 %s37, 1
      %s39 = scalar_select %p36, %s37, %s38
      %p42 = pneg %p36
      %p43 = scmp.eq.s32.totalorder %s13, 1
      %p44 = por %p42, %p43
      %p45 = scmp.ne.s32.totalorder %s37, %s40
      %p46 = scmp.eq.s32.totalorder %s13, 0
      %p47 = por %p45, %p46
      %p48 = scmp.ne.s32.totalorder %s37, %s40
      %p49 = scmp.eq.s32.totalorder %s18, 1
      %p50 = por %p48, %p49
      %p51 = scmp.ne.s32.totalorder %s40, %s41
      %p52 = scmp.eq.s32.totalorder %s18, 0
      %p53 = por %p51, %p52
      %p54 = scmp.ne.s32.totalorder %s40, %s41
      %p55 = scmp.eq.s32.totalorder %s19, 1
      %p56 = por %p54, %p55
      %p58 = scmp.ne.s32.totalorder %s41, %s57
      %p59 = scmp.eq.s32.totalorder %s19, 0
      %p60 = por %p58, %p59
      %s61 = ssub.s32 %s20, %s32
      %p62 = scmp.eq.s32.totalorder %s61, 0
      %s64 = sadd.s32 %s63, 1
      %s65 = scalar_select %p62, %s63, %s64
      %p68 = pneg %p62
      %p69 = scmp.eq.s32.totalorder %s13, 1
      %p70 = por %p68, %p69
      %p71 = scmp.ne.s32.totalorder %s63, %s66
      %p72 = scmp.eq.s32.totalorder %s13, 0
      %p73 = por %p71, %p72
      %p74 = scmp.ne.s32.totalorder %s63, %s66
      %p75 = scmp.eq.s32.totalorder %s18, 1
      %p76 = por %p74, %p75
      %p77 = scmp.ne.s32.totalorder %s66, %s67
      %p78 = scmp.eq.s32.totalorder %s18, 0
      %p79 = por %p77, %p78
      %p80 = scmp.ne.s32.totalorder %s66, %s67
      %p81 = scmp.eq.s32.totalorder %s19, 1
      %p82 = por %p80, %p81
      %p84 = scmp.ne.s32.totalorder %s67, %s83
      %p85 = scmp.eq.s32.totalorder %s19, 0
      %p86 = por %p84, %p85
      %p87 = scmp.le.s32.totalorder 1, %s13
      %p88 = scmp.lt.s32.totalorder %s13, 3
      %p89 = pnand %p87, %p88
      %p90 = pneg %p89
      // Predicated region
      $region9: #{tpu_custom_call.1} parent=5 // pred_check
        _
      $region10: #{tpu_custom_call.1} parent=5 // pred_check_branch
        %92 = sbr.rel (%p89) target = $region12
      $region11: #{tpu_custom_call.1} parent=5 // pred_region
        %s93 = ssub.s32 %s13, 1
      $region12: #{tpu_custom_call.1} parent=5 // pred_fallthru
        _
      %p94 = scmp.lt.s32.totalorder %s13, 2
      // Predicated region
      $region13: #{tpu_custom_call.1} parent=5 // pred_check
        %p95 = pneg %p94
      $region14: #{tpu_custom_call.1} parent=5 // pred_check_branch
        %97 = sbr.rel (%p95) target = $region16
      $region15: #{tpu_custom_call.1} parent=5 // pred_region
        // Predicated region
        $region17: #{tpu_custom_call.1} parent=15 // pred_check
          %p98 = pneg %p47
        $region18: #{tpu_custom_call.1} parent=15 // pred_check_branch
          %100 = sbr.rel (%p98) target = $region20
        $region19: #{tpu_custom_call.1} parent=15 // pred_region
          %s101 = sand.u32 %s37, 1
          %s102 = scalar_lea.sflag [#allocation3], %s101
          %s103 = sand.u32 %s37, 1
          %s104 = smul.addr %s103, 4
          %s105 = scalar_lea.vmem [#allocation2], %s104
          %s107 = ssub.s32 64, 64
          %108 = vsyncadd %s102, %s107
          %s109 = sadd.s32 %s21, %s20
          %s110 = smul.addr %s109, 64
          %s111 = scalar_lea.hbm %s0, %s110
          %s113 = sshll.u32 %s105, 4
          %s114 = int_to_ptr.vmem [resolvable:$true] %s113
          %116 = dma.hbm_to_vmem [thread:$0]  %s111, 64, %s114, %s102
        $region20: #{tpu_custom_call.1} parent=15 // pred_fallthru
          _
      $region16: #{tpu_custom_call.1} parent=5 // pred_fallthru
        _
      %p117 = scmp.le.s32.totalorder 1, %s13
      %p118 = scmp.lt.s32.totalorder %s13, 3
      %p119 = pnand %p117, %p118
      %p120 = pneg %p119
      // Predicated region
      $region21: #{tpu_custom_call.1} parent=5 // pred_check
        _
      $region22: #{tpu_custom_call.1} parent=5 // pred_check_branch
        %122 = sbr.rel (%p119) target = $region24
      $region23: #{tpu_custom_call.1} parent=5 // pred_region
        %s123 = ssub.s32 %s13, 1
        %s124 = sand.u32 %s40, 1
        %s125 = scalar_lea.sflag [#allocation3], %s124
        %s126 = sand.u32 %s40, 1
        %s127 = smul.addr %s126, 4
        %s128 = scalar_lea.vmem [#allocation2], %s127
        // Predicated region
        $region25: #{tpu_custom_call.1} parent=23 // pred_check
          %p129 = pneg %p53
        $region26: #{tpu_custom_call.1} parent=23 // pred_check_branch
          %131 = sbr.rel (%p129) target = $region28
        $region27: #{tpu_custom_call.1} parent=23 // pred_region
          %132 = dma.done %s125, 64
        $region28: #{tpu_custom_call.1} parent=23 // pred_fallthru
          _
        %s133 = sand.u32 %s40, 1
        %s134 = scalar_lea.sflag [#allocation3], %s133
        %s135 = sand.u32 %s40, 1
        %s136 = smul.addr %s135, 4
        %s137 = scalar_lea.vmem [#allocation2], %s136
        %p138 = pneg %p53
        %p139 = pneg %p50
        %p140 = pneg %p79
        %p141 = pneg %p76
        %s142 = sand.u32 %s66, 1
        %s143 = scalar_lea.sflag [#allocation4], %s142
        %s144 = sand.u32 %s66, 1
        %s145 = smul.addr %s144, 4
        %s146 = scalar_lea.vmem [#allocation5], %s145
        %v147 = vld [vmem:[%s128] sm:$0xf]
        %vm148 = vcmask 130048
        %v150 = vsel %vm148, %v147, 0
        %152 = vmatprep.subr.mxu0 0.0
        %153 = vmatpush1.xpose.msra.mxu0 %v150
        %154 = vmatprep.subr.mxu0 0.0
        %155 = vmatpush1.xpose.msra.mxu0 0.0
        %156 = vmatprep.subr.mxu0 0.0
        %157 = vmatpush1.xpose.msra.mxu0 0.0
        %158 = vmatprep.subr.mxu0 0.0
        %159 = vmatpush1.xpose.msra.mxu0 0.0
        %160 = vmatprep.subr.mxu0 0.0
        %161 = vmatpush1.xpose.msra.mxu0 0.0
        %162 = vmatprep.subr.mxu0 0.0
        %163 = vmatpush1.xpose.msra.mxu0 0.0
        %164 = vmatprep.subr.mxu0 0.0
        %165 = vmatpush1.xpose.msra.mxu0 0.0
        %166 = vmatprep.subr.mxu0 0.0
        %167 = vmatpush1.xpose.msra.mxu0 0.0
        %168 = vmatprep.subr.mxu0 0.0
        %169 = vmatpush1.xpose.msra.mxu0 0.0
        %170 = vmatprep.subr.mxu0 0.0
        %171 = vmatpush1.xpose.msra.mxu0 0.0
        %172 = vmatprep.subr.mxu0 0.0
        %173 = vmatpush1.xpose.msra.mxu0 0.0
        %174 = vmatprep.subr.mxu0 0.0
        %175 = vmatpush1.xpose.msra.mxu0 0.0
        %176 = vmatprep.subr.mxu0 0.0
        %177 = vmatpush1.xpose.msra.mxu0 0.0
        %178 = vmatprep.subr.mxu0 0.0
        %179 = vmatpush1.xpose.msra.mxu0 0.0
        %180 = vmatprep.subr.mxu0 0.0
        %181 = vmatpush1.xpose.msra.mxu0 0.0
        %182 = vmatprep.subr.mxu0 0.0
        %183 = vmatpush1.xpose.msra.mxu0 0.0
        %184 = vmatprep.subr.mxu0 0.0
        %185 = vmatpush1.xpose.msra.mxu0 0.0
        %186 = vmatprep.subr.mxu0 0.0
        %187 = vmatpush1.xpose.msra.mxu0 0.0
        %188 = vmatprep.subr.mxu0 0.0
        %189 = vmatpush1.xpose.msra.mxu0 0.0
        %190 = vmatprep.subr.mxu0 0.0
        %191 = vmatpush1.xpose.msra.mxu0 0.0
        %192 = vmatprep.subr.mxu0 0.0
        %193 = vmatpush1.xpose.msra.mxu0 0.0
        %194 = vmatprep.subr.mxu0 0.0
        %195 = vmatpush1.xpose.msra.mxu0 0.0
        %196 = vmatprep.subr.mxu0 0.0
        %197 = vmatpush1.xpose.msra.mxu0 0.0
        %198 = vmatprep.subr.mxu0 0.0
        %199 = vmatpush1.xpose.msra.mxu0 0.0
        %200 = vmatprep.subr.mxu0 0.0
        %201 = vmatpush1.xpose.msra.mxu0 0.0
        %202 = vmatprep.subr.mxu0 0.0
        %203 = vmatpush1.xpose.msra.mxu0 0.0
        %204 = vmatprep.subr.mxu0 0.0
        %205 = vmatpush1.xpose.msra.mxu0 0.0
        %206 = vmatprep.subr.mxu0 0.0
        %207 = vmatpush1.xpose.msra.mxu0 0.0
        %208 = vmatprep.subr.mxu0 0.0
        %209 = vmatpush1.xpose.msra.mxu0 0.0
        %210 = vmatprep.subr.mxu0 0.0
        %211 = vmatpush1.xpose.msra.mxu0 0.0
        %212 = vmatprep.subr.mxu0 0.0
        %213 = vmatpush1.xpose.msra.mxu0 0.0
        %214 = vmatprep.subr.mxu0 0.0
        %215 = vmatpush1.xpose.msra.mxu0 0.0
        %216 = vmatprep.mubr.f32.mxu0 0.0
        %217 = vmatmul.mubr.f32.gmra.mrb[0].mxu0 %v150
        %v218 = vpop.f32.mrb[0].mxu0
        %v219 = vadd.f32 0.0, %v218
        %v220 = vpop.f32.mrb[0].mxu0
        %221 = vdwg.mxu0
        %v222 = vmul.f32 %v219, 0.06666667
        %vm223 = vcmask 27648
        %224 = vst.msk [vmem:[%s146] sm:$0xf] %vm223, %v222
        %s225 = sand.u32 %s66, 1
        %s226 = scalar_lea.sflag [#allocation4], %s225
        %s227 = sand.u32 %s66, 1
        %s228 = smul.addr %s227, 4
        %s229 = scalar_lea.vmem [#allocation5], %s228
        // Predicated region
        $region29: #{tpu_custom_call.1} parent=23 // pred_check
          %p230 = pneg %p76
        $region30: #{tpu_custom_call.1} parent=23 // pred_check_branch
          %232 = sbr.rel (%p230) target = $region32
        $region31: #{tpu_custom_call.1} parent=23 // pred_region
          %s234 = ssub.s32 64, 64
          %235 = vsyncadd %s226, %s234
          %s236 = smul.addr %s22, 64
          %s237 = scalar_lea.hbm %s1, %s236
          %s239 = sshll.u32 %s229, 4
          %s240 = int_to_ptr.vmem [resolvable:$true] %s239
          %242 = dma.vmem_to_hbm [thread:$0]  %s240, 64, %s237, %s226
        $region32: #{tpu_custom_call.1} parent=23 // pred_fallthru
          _
      $region24: #{tpu_custom_call.1} parent=5 // pred_fallthru
        _
      %p243 = scmp.le.s32.totalorder 2, %s13
      // Predicated region
      $region33: #{tpu_custom_call.1} parent=5 // pred_check
        %p244 = pneg %p243
      $region34: #{tpu_custom_call.1} parent=5 // pred_check_branch
        %246 = sbr.rel (%p244) target = $region36
      $region35: #{tpu_custom_call.1} parent=5 // pred_region
        %s247 = ssub.s32 %s13, 2
        // Predicated region
        $region37: #{tpu_custom_call.1} parent=35 // pred_check
          %p248 = pneg %p82
        $region38: #{tpu_custom_call.1} parent=35 // pred_check_branch
          %250 = sbr.rel (%p248) target = $region40
        $region39: #{tpu_custom_call.1} parent=35 // pred_region
          %s251 = sand.u32 %s67, 1
          %s252 = scalar_lea.sflag [#allocation4], %s251
          %s253 = sand.u32 %s67, 1
          %s254 = smul.addr %s253, 4
          %s255 = scalar_lea.vmem [#allocation5], %s254
          %256 = dma.done %s252, 64
        $region40: #{tpu_custom_call.1} parent=35 // pred_fallthru
          _
      $region36: #{tpu_custom_call.1} parent=5 // pred_fallthru
        _
    $region6: #{tpu_custom_call.1} parent=1 // loop_footer
      %s17 = sadd.s32 1, %s13
    $region7: #{tpu_custom_call.1} parent=1 // loop_footer_branch
      %12 = sbr.rel target = $region3
    $region8: #{tpu_custom_call.1} parent=1 // loop_exit
      _
    %257 = vsyncpa [#allocation3], 1
    %s258 = scalar_lea.sflag [#allocation3], 1
    %259 = vsyncpa %s258, 1
    %260 = vsyncpa [#allocation4], 1
    %s261 = scalar_lea.sflag [#allocation4], 1
    %262 = vsyncpa %s261, 1

</llo_original>
